<compile_context>
chip_gen: v7x
topology: tpu7x:2x2x1
jax: 0.10.0
libtpu: 0.0.40
codegen_flags: <defaults>
</compile_context>

<pallas_src>
import jax
import jax.numpy as jnp
import numpy as np
from jax.experimental import pallas as pl
from jax.experimental.pallas import tpu as pltpu


# ---------------------------------------------------------------------------
# Kernel: grid = (batch, time_chunks)
#   x_ref:   (1, C_in, Tc)     current batch element, current time chunk
#   w_ref:   (C_out, C_in)     raw weights (resident; constant index_map)
#   tri_ref: (Tc, Tc)          upper-triangular ones, tri[s, t] = 1 if s <= t
#   o_ref:   (1, C_out, Tc)
#   wq_ref:  (C_out, C_in)     VMEM scratch, quantized weights
#   carry_ref: (C_out, 1)      VMEM scratch, running cumulative sum over time
# ---------------------------------------------------------------------------
def _output_block_kernel(x_ref, w_ref, tri_ref, o_ref, wq_ref, carry_ref):
    t_chunk = pl.program_id(1)

    @pl.when(t_chunk == 0)
    def _():
        # --- 8-bit weight quantization (neuron.quantize_8bit, scale = 1<<6) ---
        # Done once per batch element (not once per time chunk).
        scale = 64.0
        step = 2.0 / scale  # = 1/32
        w = w_ref[...]
        wq_ref[...] = jnp.clip(
            jnp.round(w * (1.0 / step)) * step, -256.0 / scale, 255.0 / scale
        )
        # Reset the time-cumsum carry at the start of every batch element.
        carry_ref[...] = jnp.zeros_like(carry_ref)

    x = x_ref[0]            # (C_in, Tc)
    w_q = wq_ref[...]       # (C_out, C_in)

    # --- Dense synapse: (C_out, C_in) @ (C_in, Tc) -> (C_out, Tc); no transpose.
    y = jnp.dot(w_q, x, preferred_element_type=jnp.float32)

    # --- Sigma decoder: intra-chunk cumulative sum over time as an MXU matmul
    #     with the resident upper-triangular matrix; no transpose.
    cum = jnp.dot(y, tri_ref[...], preferred_element_type=jnp.float32)

    # Add the running sum from previous time chunks (broadcast over lanes).
    out = cum + carry_ref[...]
    o_ref[0] = out.astype(o_ref.dtype)

    # Carry forward the cumulative total up to the end of this chunk.
    tc = out.shape[1]
    carry_ref[...] = out[:, tc - 1:tc]


def _pick_time_chunk(T, max_tc=256):
    """Return (padded_T, Tc) satisfying the TPU block constraints."""
    if T <= max_tc:
        return T, T                       # single chunk, block == full dim
    Tp = ((T + 127) // 128) * 128         # pad to a lane multiple
    Tc = max_tc if Tp % max_tc == 0 else 128
    return Tp, Tc


def output_block_forward(x, weight, *, max_tc=256):
    """x: (N, C_in, T) float32 (PyTorch layout); weight: (C_out, C_in) float32.

    Returns (N, C_out, T) float32 = cumsum over time of the 8-bit-quantized
    dense synapse output (the Output block forward with count_log=False).
    """
    N, C_in, T = x.shape
    C_out = weight.shape[0]

    Tp, Tc = _pick_time_chunk(T, max_tc)
    if Tp != T:
        # Zero-padded time steps just extend the cumsum; sliced off below.
        x = jnp.pad(x, ((0, 0), (0, 0), (0, Tp - T)))
    num_chunks = Tp // Tc

    # Upper-triangular cumsum matrix (built once, passed in, stays VMEM-resident).
    tri = (jnp.arange(Tc)[:, None] <= jnp.arange(Tc)[None, :]).astype(jnp.float32)

    out = pl.pallas_call(
        _output_block_kernel,
        out_shape=jax.ShapeDtypeStruct((N, C_out, Tp), jnp.float32),
        grid=(N, num_chunks),
        in_specs=[
            pl.BlockSpec((1, C_in, Tc), lambda n, t: (n, 0, t)),
            pl.BlockSpec((C_out, C_in), lambda n, t: (0, 0)),
            pl.BlockSpec((Tc, Tc), lambda n, t: (0, 0)),
        ],
        out_specs=pl.BlockSpec((1, C_out, Tc), lambda n, t: (n, 0, t)),
        scratch_shapes=[
            pltpu.VMEM((C_out, C_in), jnp.float32),   # quantized weights
            pltpu.VMEM((C_out, 1), jnp.float32),      # running time cumsum carry
        ],
        compiler_params=pltpu.CompilerParams(
            dimension_semantics=("parallel", "arbitrary"),
        ),
    )(x, weight, tri)

    if Tp != T:
        out = out[:, :, :T]
    return out


# ---------------------------------------------------------------------------
# Pure-JAX reference (for correctness check)
# ---------------------------------------------------------------------------
def _reference(x, weight):
    scale = 64.0
    step = 2.0 / scale
    w_q = jnp.clip(jnp.round(weight / step) * step, -256.0 / scale, 255.0 / scale)
    y = jnp.einsum("oc,nct->not", w_q, x)    # dense synapse, PyTorch layout
    return jnp.cumsum(y, axis=-1)            # neuron.sigma over time


if __name__ == "__main__":
    key = jax.random.PRNGKey(0)

    # --- Small shapes: batch=2, in_neurons=32, out_neurons=16, time steps=8 ---
    N, C_in, C_out, T = 2, 32, 16, 8
    kx, kw, kx2, kw2 = jax.random.split(key, 4)

    x = jax.random.normal(kx, (N, C_in, T), dtype=jnp.float32)
    # Deterministic weight init (stand-in for Dense's kaiming-uniform * weight_scale).
    weight = jax.random.uniform(
        kw, (C_out, C_in), dtype=jnp.float32, minval=-1.0, maxval=1.0
    )

    out = jax.block_until_ready(output_block_forward(x, weight))
    np.testing.assert_allclose(
        np.asarray(out), np.asarray(_reference(x, weight)), rtol=1e-5, atol=1e-5
    )

    # --- Also exercise the time-chunked (multi-chunk, carry) path ---
    N2, C_in2, C_out2, T2 = 1, 16, 8, 384        # -> Tc=128, 3 chunks
    x2 = jax.random.normal(kx2, (N2, C_in2, T2), dtype=jnp.float32)
    w2 = jax.random.uniform(
        kw2, (C_out2, C_in2), dtype=jnp.float32, minval=-1.0, maxval=1.0
    )
    out2 = jax.block_until_ready(output_block_forward(x2, w2))
    np.testing.assert_allclose(
        np.asarray(out2), np.asarray(_reference(x2, w2)), rtol=1e-5, atol=1e-4
    )

    # TODO(synk): count_log=True branch (returns mean(x > 0) alongside x) not
    # implemented; the module defaults to count_log=False.
    print("KERNEL_OK")
</pallas_src>

<mosaic_0001>
module attributes {stable_mosaic.version = 11 : i64} {
  func.func @_output_block_kernel(%arg0: i32, %arg1: i32, %arg2: memref<1x32x8xf32, #tpu.memory_space<vmem>>, %arg3: memref<16x32xf32, #tpu.memory_space<vmem>>, %arg4: memref<8x8xf32, #tpu.memory_space<vmem>>, %arg5: memref<1x16x8xf32, #tpu.memory_space<vmem>>, %arg6: memref<16x32xf32, #tpu.memory_space<vmem>>, %arg7: memref<16x1xf32, #tpu.memory_space<vmem>>) attributes {dimension_semantics = [#tpu.dimension_semantics<parallel>, #tpu.dimension_semantics<arbitrary>], iteration_bounds = array<i64: 2, 1>, scalar_prefetch = 0 : i64, scratch_operands = 2 : i64, tpu.core_type = #tpu.core_type<tc>, window_params = [{transform_indices = @transform_0, window_bounds = array<i64: 1, 32, 8>}, {pipeline_mode = #tpu.pipeline_mode<synchronous>, transform_indices = @transform_1, window_bounds = array<i64: 16, 32>}, {pipeline_mode = #tpu.pipeline_mode<synchronous>, transform_indices = @transform_2, window_bounds = array<i64: 8, 8>}, {transform_indices = @transform_3, window_bounds = array<i64: 1, 16, 8>}]} {
    %c0_i32 = arith.constant 0 : i32
    %0 = arith.cmpi eq, %arg1, %c0_i32 : i32
    %1 = arith.extui %0 : i1 to i32
    %c0_i32_0 = arith.constant 0 : i32
    %2 = arith.cmpi ne, %1, %c0_i32_0 : i32
    scf.if %2 {
      %c0_15 = arith.constant 0 : index
      %c0_16 = arith.constant 0 : index
      %17 = vector.load %arg3[%c0_15, %c0_16] : memref<16x32xf32, #tpu.memory_space<vmem>>, vector<16x32xf32>
      %cst_17 = arith.constant 3.200000e+01 : f32
      %18 = vector.broadcast %cst_17 : f32 to vector<16x32xf32>
      %19 = arith.mulf %17, %18 : vector<16x32xf32>
      %20 = math.roundeven %19 : vector<16x32xf32>
      %cst_18 = arith.constant 3.125000e-02 : f32
      %21 = vector.broadcast %cst_18 : f32 to vector<16x32xf32>
      %22 = arith.mulf %20, %21 : vector<16x32xf32>
      %cst_19 = arith.constant -4.000000e+00 : f32
      %cst_20 = arith.constant 3.984375 : f32
      %23 = vector.broadcast %cst_19 : f32 to vector<16x32xf32>
      %24 = arith.maximumf %23, %22 : vector<16x32xf32>
      %25 = vector.broadcast %cst_20 : f32 to vector<16x32xf32>
      %26 = arith.minimumf %25, %24 : vector<16x32xf32>
      %c0_21 = arith.constant 0 : index
      %c0_22 = arith.constant 0 : index
      %27 = vector.load %arg6[%c0_21, %c0_22] : memref<16x32xf32, #tpu.memory_space<vmem>>, vector<16x32xf32>
      tpu.vector_store %arg6[%c0_21, %c0_22], %26 {strides = array<i32>} : memref<16x32xf32, #tpu.memory_space<vmem>>, vector<16x32xf32>,
      %cst_23 = arith.constant 0.000000e+00 : f32
      %28 = vector.broadcast %cst_23 : f32 to vector<16x1xf32>
      %c0_24 = arith.constant 0 : index
      %c0_25 = arith.constant 0 : index
      %29 = vector.load %arg7[%c0_24, %c0_25] : memref<16x1xf32, #tpu.memory_space<vmem>>, vector<16x1xf32>
      tpu.vector_store %arg7[%c0_24, %c0_25], %28 {strides = array<i32>} : memref<16x1xf32, #tpu.memory_space<vmem>>, vector<16x1xf32>,
    } else {
    }
    %c0 = arith.constant 0 : index
    %c0_1 = arith.constant 0 : index
    %c0_2 = arith.constant 0 : index
    %3 = vector.load %arg2[%c0, %c0_1, %c0_2] : memref<1x32x8xf32, #tpu.memory_space<vmem>>, vector<1x32x8xf32>
    %4 = vector.shape_cast %3 : vector<1x32x8xf32> to vector<32x8xf32>
    %c0_3 = arith.constant 0 : index
    %c0_4 = arith.constant 0 : index
    %5 = vector.load %arg6[%c0_3, %c0_4] : memref<16x32xf32, #tpu.memory_space<vmem>>, vector<16x32xf32>
    %cst = arith.constant dense<0.000000e+00> : vector<16x8xf32>
    %6 = tpu.matmul %5, %4, %cst {dimension_numbers = #tpu.dot_dimension_numbers<[1], [0], [0], [1], [0, 0, 1, 1], [], []>} : vector<16x32xf32>, vector<32x8xf32>, vector<16x8xf32> -> vector<16x8xf32>
    %c0_5 = arith.constant 0 : index
    %c0_6 = arith.constant 0 : index
    %7 = vector.load %arg4[%c0_5, %c0_6] : memref<8x8xf32, #tpu.memory_space<vmem>>, vector<8x8xf32>
    %cst_7 = arith.constant dense<0.000000e+00> : vector<16x8xf32>
    %8 = tpu.matmul %6, %7, %cst_7 {dimension_numbers = #tpu.dot_dimension_numbers<[1], [0], [0], [1], [0, 0, 1, 1], [], []>} : vector<16x8xf32>, vector<8x8xf32>, vector<16x8xf32> -> vector<16x8xf32>
    %c0_8 = arith.constant 0 : index
    %c0_9 = arith.constant 0 : index
    %9 = vector.load %arg7[%c0_8, %c0_9] : memref<16x1xf32, #tpu.memory_space<vmem>>, vector<16x1xf32>
    %10 = vector.broadcast %9 : vector<16x1xf32> to vector<16x8xf32>
    %11 = arith.addf %8, %10 : vector<16x8xf32>
    %c0_10 = arith.constant 0 : index
    %c0_11 = arith.constant 0 : index
    %c0_12 = arith.constant 0 : index
    %12 = vector.load %arg5[%c0_10, %c0_11, %c0_12] : memref<1x16x8xf32, #tpu.memory_space<vmem>>, vector<1x16x8xf32>
    %13 = vector.shape_cast %12 : vector<1x16x8xf32> to vector<16x8xf32>
    %14 = vector.shape_cast %11 : vector<16x8xf32> to vector<1x16x8xf32>
    tpu.vector_store %arg5[%c0_10, %c0_11, %c0_12], %14 {strides = array<i32>} : memref<1x16x8xf32, #tpu.memory_space<vmem>>, vector<1x16x8xf32>,
    %15 = vector.extract_strided_slice %11 {offsets = [0, 7], sizes = [16, 1], strides = [1, 1]} : vector<16x8xf32> to vector<16x1xf32>
    %c0_13 = arith.constant 0 : index
    %c0_14 = arith.constant 0 : index
    %16 = vector.load %arg7[%c0_13, %c0_14] : memref<16x1xf32, #tpu.memory_space<vmem>>, vector<16x1xf32>
    tpu.vector_store %arg7[%c0_13, %c0_14], %15 {strides = array<i32>} : memref<16x1xf32, #tpu.memory_space<vmem>>, vector<16x1xf32>,
    return
  }
  func.func @transform_0(%arg0: i32, %arg1: i32) -> (i32, i32, i32) {
    %c0_i32 = arith.constant 0 : i32
    %c0_i32_0 = arith.constant 0 : i32
    return %arg0, %c0_i32, %arg1 : i32, i32, i32
  }
  func.func @transform_1(%arg0: i32, %arg1: i32) -> (i32, i32) {
    %c0_i32 = arith.constant 0 : i32
    %c0_i32_0 = arith.constant 0 : i32
    %c0_i32_1 = arith.constant 0 : i32
    return %c0_i32, %c0_i32_0 : i32, i32
  }
  func.func @transform_2(%arg0: i32, %arg1: i32) -> (i32, i32) {
    %c0_i32 = arith.constant 0 : i32
    %c0_i32_0 = arith.constant 0 : i32
    %c0_i32_1 = arith.constant 0 : i32
    return %c0_i32, %c0_i32_0 : i32, i32
  }
  func.func @transform_3(%arg0: i32, %arg1: i32) -> (i32, i32, i32) {
    %c0_i32 = arith.constant 0 : i32
    %c0_i32_0 = arith.constant 0 : i32
    return %arg0, %c0_i32, %arg1 : i32, i32, i32
  }
}

</mosaic_0001>

<llo_original>
// kernel: tpu_custom_call.1
$region0: #{tpu_custom_call.1}
  #allocation0 [shape = 'u32[]', space=smem, size = 0x4, offset = 0x4, fixed_abs, tag = 'smem constant byte address 0x4 - core index']
  #allocation1 [shape = 'u32[144,128]{1,0:T(1,128)}', space=vmem, size = 0x12000, scoped, tag = 'internal scratch']
  #allocation2 [shape = 'f32[16,32]{1,0:T(8,128)}', space=vmem, size = 0x2000, scoped, tag = 'scratch operand']
  #allocation3 [shape = 'f32[16,1]{1,0:T(8,128)}', space=vmem, size = 0x2000, scoped, tag = 'scratch operand']
  %s0 = inlined_call_operand.vmem [shape: f32[2,32,8], index: 0, kind: input, shape index: {}]
  %s1 = inlined_call_operand.vmem [shape: f32[16,32], index: 1, kind: input, shape index: {}]
  %s2 = inlined_call_operand.vmem [shape: f32[8,8], index: 2, kind: input, shape index: {}]
  %s3 = inlined_call_operand.vmem [shape: f32[2,16,8], index: 3, kind: output, shape index: {}]
  %s4 = sld [smem:[#allocation0]]
  $region49: #{tpu_custom_call.1} parent=0
    _
  %s6 = ssub.s32 1, %s4
  %s7 = scalar_select 0, %s6, %s4
  loop: start=0, step=1, limit=4
  $region2: #{tpu_custom_call.1} parent=0 // loop_pre_header
    _
  $region3: #{tpu_custom_call.1} parent=0 // loop_header
    %s9 = sphi 0, %s13
    %p10 = scmp.ge.s32.totalorder %s9, 4
    %s16 = sphi 0, %s28
    %s17 = sphi 0, %s24
    %s18 = sphi 0, %s16
    %s19 = sphi 0, %s17
    %s20 = sphi 0, %s18
    %s21 = sphi 0, %s19
    %s33 = sphi 0, %s35
    %s36 = sphi 0, %s33
    %s37 = sphi 0, %s36
    %s53 = sphi 0, %s37
    %s57 = sphi 0, %s57
    %s59 = sphi 0, %s57
    %s60 = sphi 0, %s59
    %s74 = sphi 0, %s60
    %s78 = sphi 0, %s78
    %s80 = sphi 0, %s78
    %s81 = sphi 0, %s80
    %s95 = sphi 0, %s81
    %s103 = sphi 0, %s105
    %s106 = sphi 0, %s103
    %s107 = sphi 0, %s106
    %s123 = sphi 0, %s107
  $region4: #{tpu_custom_call.1} parent=0 // loop_header_branch
    %12 = sbr.rel (%p10) target = $region8
  $region5: #{tpu_custom_call.1} parent=0 // loop_body
    %s14 = ssub.s32 %s9, 1
    %s15 = ssub.s32 %s9, 2
    %s22 = sadd.s32 1, %s17
    %p23 = scmp.ge.s32.totalorder %s22, 1
    %s24 = scalar_select %p23, 0, %s22
    %s25 = sadd.s32 1, %s16
    %s26 = scalar_select %p23, %s25, %s16
    %p27 = scmp.ge.s32.totalorder %s26, 2
    %s28 = scalar_select %p27, 0, %s26
    %s29 = ssub.s32 %s16, %s28
    %s30 = ssub.s32 %s17, %s24
    %s31 = sor.u32 %s29, %s30
    %p32 = scmp.eq.s32.totalorder %s31, 0
    %s34 = sadd.s32 %s33, 1
    %s35 = scalar_select %p32, %s33, %s34
    %p38 = pneg %p32
    %p39 = scmp.eq.s32.totalorder %s9, 1
    %p40 = por %p38, %p39
    %p41 = scmp.ne.s32.totalorder %s33, %s36
    %p42 = scmp.eq.s32.totalorder %s9, 0
    %p43 = por %p41, %p42
    %p44 = scmp.ne.s32.totalorder %s33, %s36
    %p45 = scmp.eq.s32.totalorder %s14, 1
    %p46 = por %p44, %p45
    %p47 = scmp.ne.s32.totalorder %s36, %s37
    %p48 = scmp.eq.s32.totalorder %s14, 0
    %p49 = por %p47, %p48
    %p50 = scmp.ne.s32.totalorder %s36, %s37
    %p51 = scmp.eq.s32.totalorder %s15, 1
    %p52 = por %p50, %p51
    %p54 = scmp.ne.s32.totalorder %s37, %s53
    %p55 = scmp.eq.s32.totalorder %s15, 0
    %p56 = por %p54, %p55
    %s58 = sadd.s32 %s57, 1
    %p61 = scmp.eq.s32.totalorder %s9, 1
    %p62 = scmp.ne.s32.totalorder %s57, %s59
    %p63 = scmp.eq.s32.totalorder %s9, 0
    %p64 = por %p62, %p63
    %p65 = scmp.ne.s32.totalorder %s57, %s59
    %p66 = scmp.eq.s32.totalorder %s14, 1
    %p67 = por %p65, %p66
    %p68 = scmp.ne.s32.totalorder %s59, %s60
    %p69 = scmp.eq.s32.totalorder %s14, 0
    %p70 = por %p68, %p69
    %p71 = scmp.ne.s32.totalorder %s59, %s60
    %p72 = scmp.eq.s32.totalorder %s15, 1
    %p73 = por %p71, %p72
    %p75 = scmp.ne.s32.totalorder %s60, %s74
    %p76 = scmp.eq.s32.totalorder %s15, 0
    %p77 = por %p75, %p76
    %s79 = sadd.s32 %s78, 1
    %p82 = scmp.eq.s32.totalorder %s9, 1
    %p83 = scmp.ne.s32.totalorder %s78, %s80
    %p84 = scmp.eq.s32.totalorder %s9, 0
    %p85 = por %p83, %p84
    %p86 = scmp.ne.s32.totalorder %s78, %s80
    %p87 = scmp.eq.s32.totalorder %s14, 1
    %p88 = por %p86, %p87
    %p89 = scmp.ne.s32.totalorder %s80, %s81
    %p90 = scmp.eq.s32.totalorder %s14, 0
    %p91 = por %p89, %p90
    %p92 = scmp.ne.s32.totalorder %s80, %s81
    %p93 = scmp.eq.s32.totalorder %s15, 1
    %p94 = por %p92, %p93
    %p96 = scmp.ne.s32.totalorder %s81, %s95
    %p97 = scmp.eq.s32.totalorder %s15, 0
    %p98 = por %p96, %p97
    %s99 = ssub.s32 %s16, %s28
    %s100 = ssub.s32 %s17, %s24
    %s101 = sor.u32 %s99, %s100
    %p102 = scmp.eq.s32.totalorder %s101, 0
    %s104 = sadd.s32 %s103, 1
    %s105 = scalar_select %p102, %s103, %s104
    %p108 = pneg %p102
    %p109 = scmp.eq.s32.totalorder %s9, 1
    %p110 = por %p108, %p109
    %p111 = scmp.ne.s32.totalorder %s103, %s106
    %p112 = scmp.eq.s32.totalorder %s9, 0
    %p113 = por %p111, %p112
    %p114 = scmp.ne.s32.totalorder %s103, %s106
    %p115 = scmp.eq.s32.totalorder %s14, 1
    %p116 = por %p114, %p115
    %p117 = scmp.ne.s32.totalorder %s106, %s107
    %p118 = scmp.eq.s32.totalorder %s14, 0
    %p119 = por %p117, %p118
    %p120 = scmp.ne.s32.totalorder %s106, %s107
    %p121 = scmp.eq.s32.totalorder %s15, 1
    %p122 = por %p120, %p121
    %p124 = scmp.ne.s32.totalorder %s107, %s123
    %p125 = scmp.eq.s32.totalorder %s15, 0
    %p126 = por %p124, %p125
    %p127 = scmp.le.s32.totalorder 1, %s9
    %p128 = scmp.lt.s32.totalorder %s9, 3
    %p129 = pnand %p127, %p128
    %p130 = pneg %p129
    // Predicated region
    $region9: #{tpu_custom_call.1} parent=5 // pred_check
      _
    $region10: #{tpu_custom_call.1} parent=5 // pred_check_branch
      %132 = sbr.rel (%p129) target = $region12
    $region11: #{tpu_custom_call.1} parent=5 // pred_region
      %s133 = ssub.s32 %s9, 1
      // Predicated region
      $region13: #{tpu_custom_call.1} parent=11 // pred_check
        %p134 = pneg %p70
      $region14: #{tpu_custom_call.1} parent=11 // pred_check_branch
        %136 = sbr.rel (%p134) target = $region16
      $region15: #{tpu_custom_call.1} parent=11 // pred_region
        _
      $region16: #{tpu_custom_call.1} parent=11 // pred_fallthru
        _
      // Predicated region
      $region17: #{tpu_custom_call.1} parent=11 // pred_check
        %p137 = pneg %p91
      $region18: #{tpu_custom_call.1} parent=11 // pred_check_branch
        %139 = sbr.rel (%p137) target = $region20
      $region19: #{tpu_custom_call.1} parent=11 // pred_region
        _
      $region20: #{tpu_custom_call.1} parent=11 // pred_fallthru
        _
    $region12: #{tpu_custom_call.1} parent=5 // pred_fallthru
      _
    %p140 = scmp.lt.s32.totalorder %s9, 2
    // Predicated region
    $region21: #{tpu_custom_call.1} parent=5 // pred_check
      %p141 = pneg %p140
    $region22: #{tpu_custom_call.1} parent=5 // pred_check_branch
      %143 = sbr.rel (%p141) target = $region24
    $region23: #{tpu_custom_call.1} parent=5 // pred_region
      // Predicated region
      $region25: #{tpu_custom_call.1} parent=23 // pred_check
        %p144 = pneg %p43
      $region26: #{tpu_custom_call.1} parent=23 // pred_check_branch
        %146 = sbr.rel (%p144) target = $region28
      $region27: #{tpu_custom_call.1} parent=23 // pred_region
        %p147 = scmp.lt.s32.totalorder %s16, 1
        %s148 = scalar_select %p147, %s16, 1
        %p149 = scmp.lt.s32.totalorder %s17, 0
        %s150 = scalar_select %p149, %s17, 0
        %s151 = smul.addr %s148, 4
        %s152 = sadd.s32 %s150, %s151
        %s153 = smul.addr %s152, 8
        %s154 = scalar_lea.vmem %s0, %s153
      $region28: #{tpu_custom_call.1} parent=23 // pred_fallthru
        _
    $region24: #{tpu_custom_call.1} parent=5 // pred_fallthru
      _
    %p155 = scmp.le.s32.totalorder 1, %s9
    %p156 = scmp.lt.s32.totalorder %s9, 3
    %p157 = pnand %p155, %p156
    %p158 = pneg %p157
    // Predicated region
    $region29: #{tpu_custom_call.1} parent=5 // pred_check
      _
    $region30: #{tpu_custom_call.1} parent=5 // pred_check_branch
      %160 = sbr.rel (%p157) target = $region32
    $region31: #{tpu_custom_call.1} parent=5 // pred_region
      %s161 = ssub.s32 %s9, 1
      %p162 = scmp.lt.s32.totalorder %s18, 1
      %s163 = scalar_select %p162, %s18, 1
      %p164 = scmp.lt.s32.totalorder %s19, 0
      %s165 = scalar_select %p164, %s19, 0
      %s166 = smul.addr %s163, 4
      %s167 = sadd.s32 %s165, %s166
      %s168 = smul.addr %s167, 8
      %s169 = scalar_lea.vmem %s0, %s168
      %p170 = pneg %p49
      %p171 = pneg %p46
      %p172 = pneg %p70
      %p173 = pneg %p67
      %p174 = pneg %p91
      %p175 = pneg %p88
      %p176 = pneg %p119
      %p177 = pneg %p116
      %p178 = scmp.lt.s32.totalorder %s18, 1
      %s179 = scalar_select %p178, %s18, 1
      %p180 = scmp.lt.s32.totalorder %s19, 0
      %s181 = scalar_select %p180, %s19, 0
      %s182 = smul.addr %s179, 2
      %s183 = sadd.s32 %s181, %s182
      %s184 = smul.addr %s183, 8
      %s185 = scalar_lea.vmem %s3, %s184
      %p186 = scmp.lt.s32.totalorder %s18, 1
      %s187 = scalar_select %p186, %s18, 1
      %p188 = scmp.lt.s32.totalorder %s19, 0
      %s189 = scalar_select %p188, %s19, 0
      %s190 = smul.addr %s187, 4
      %s191 = sadd.s32 %s189, %s190
      %s192 = smul.addr %s191, 8
      %s193 = scalar_lea.vmem %s0, %s192
      %p194 = scmp.lt.s32.totalorder %s18, 1
      %s195 = scalar_select %p194, %s18, 1
      %p196 = scmp.lt.s32.totalorder %s19, 0
      %s197 = scalar_select %p196, %s19, 0
      %s198 = smul.addr %s195, 2
      %s199 = sadd.s32 %s197, %s198
      %s200 = smul.addr %s199, 8
      %s201 = scalar_lea.vmem %s3, %s200
      %p202 = scmp.eq.s32.totalorder %s19, 0
      // Predicated region
      $region33: #{tpu_custom_call.1} parent=31 // pred_check
        %p203 = pneg %p202
      $region34: #{tpu_custom_call.1} parent=31 // pred_check_branch
        %205 = sbr.rel (%p203) target = $region36
      $region35: #{tpu_custom_call.1} parent=31 // pred_region
        %v206 = vld [vmem:[%s1] sm:$0xff]
        %v207 = vld [vmem:[%s1 + $0x8] sm:$0xff]
        %v208 = vmul.f32 %v206, 32.0
        %v209 = vmul.f32 %v207, 32.0
        %v210 = vround.ne.pseudo %v208
        %v211 = vround.ne.pseudo %v209
        %v212 = vmul.f32 %v210, 0.03125
        %v213 = vmul.f32 %v211, 0.03125
        %v214 = vmax.f32 %v212, -4.0
        %v215 = vmax.f32 %v213, -4.0
        %v216 = vmin.f32 %v214, 3.984375
        %v217 = vmin.f32 %v215, 3.984375
        %vm218 = vcmask 261120
        %219 = vst.msk [vmem:[#allocation2] sm:$0xff] %vm218, %v216
        %220 = vst.msk [vmem:[#allocation2 + $0x8] sm:$0xff] %vm218, %v217
        %vm221 = vcmask 7168
        %222 = vst.msk [vmem:[#allocation3] sm:$0xff] %vm221, 0.0
        %223 = vst.msk [vmem:[#allocation3 + $0x8] sm:$0xff] %vm221, 0.0
      $region36: #{tpu_custom_call.1} parent=31 // pred_fallthru
        _
      %v224 = vld [vmem:[%s193] sm:$0xff]
      %v225 = vld [vmem:[%s193 + $0x8] sm:$0xff]
      %v226 = vld [vmem:[%s193 + $0x10] sm:$0xff]
      %v227 = vld [vmem:[%s193 + $0x18] sm:$0xff]
      %v228 = vld [vmem:[#allocation2] sm:$0xff]
      %v229 = vld [vmem:[#allocation2 + $0x8] sm:$0xff]
      %vm230 = vcmask 261120
      %v232 = vsel %vm230, %v228, 0
      %v235 = vsel %vm230, %v229, 0
      %237 = vmatprep.subr.mxu0 0.0
      %238 = vmatpush1.msra.mxu0 %v224
      %239 = vmatprep.subr.mxu0 0.0
      %240 = vmatpush1.msra.mxu0 %v225
      %241 = vmatprep.subr.mxu0 0.0
      %242 = vmatpush1.msra.mxu0 %v226
      %243 = vmatprep.subr.mxu0 0.0
      %244 = vmatpush1.msra.mxu0 %v227
      %245 = vmatprep.subr.mxu0 0.0
      %246 = vmatpush1.msra.mxu0 0.0
      %247 = vmatprep.subr.mxu0 0.0
      %248 = vmatpush1.msra.mxu0 0.0
      %249 = vmatprep.subr.mxu0 0.0
      %250 = vmatpush1.msra.mxu0 0.0
      %251 = vmatprep.subr.mxu0 0.0
      %252 = vmatpush1.msra.mxu0 0.0
      %253 = vmatprep.subr.mxu0 0.0
      %254 = vmatpush1.msra.mxu0 0.0
      %255 = vmatprep.subr.mxu0 0.0
      %256 = vmatpush1.msra.mxu0 0.0
      %257 = vmatprep.subr.mxu0 0.0
      %258 = vmatpush1.msra.mxu0 0.0
      %259 = vmatprep.subr.mxu0 0.0
      %260 = vmatpush1.msra.mxu0 0.0
      %261 = vmatprep.subr.mxu0 0.0
      %262 = vmatpush1.msra.mxu0 0.0
      %263 = vmatprep.subr.mxu0 0.0
      %264 = vmatpush1.msra.mxu0 0.0
      %265 = vmatprep.subr.mxu0 0.0
      %266 = vmatpush1.msra.mxu0 0.0
      %267 = vmatprep.subr.mxu0 0.0
      %268 = vmatpush1.msra.mxu0 0.0
      %269 = vmatprep.subr.mxu0 0.0
      %270 = vmatpush1.msra.mxu0 0.0
      %271 = vmatprep.subr.mxu0 0.0
      %272 = vmatpush1.msra.mxu0 0.0
      %273 = vmatprep.subr.mxu0 0.0
      %274 = vmatpush1.msra.mxu0 0.0
      %275 = vmatprep.subr.mxu0 0.0
      %276 = vmatpush1.msra.mxu0 0.0
      %277 = vmatprep.subr.mxu0 0.0
      %278 = vmatpush1.msra.mxu0 0.0
      %279 = vmatprep.subr.mxu0 0.0
      %280 = vmatpush1.msra.mxu0 0.0
      %281 = vmatprep.subr.mxu0 0.0
      %282 = vmatpush1.msra.mxu0 0.0
      %283 = vmatprep.subr.mxu0 0.0
      %284 = vmatpush1.msra.mxu0 0.0
      %285 = vmatprep.subr.mxu0 0.0
      %286 = vmatpush1.msra.mxu0 0.0
      %287 = vmatprep.subr.mxu0 0.0
      %288 = vmatpush1.msra.mxu0 0.0
      %289 = vmatprep.subr.mxu0 0.0
      %290 = vmatpush1.msra.mxu0 0.0
      %291 = vmatprep.subr.mxu0 0.0
      %292 = vmatpush1.msra.mxu0 0.0
      %293 = vmatprep.subr.mxu0 0.0
      %294 = vmatpush1.msra.mxu0 0.0
      %295 = vmatprep.subr.mxu0 0.0
      %296 = vmatpush1.msra.mxu0 0.0
      %297 = vmatprep.subr.mxu0 0.0
      %298 = vmatpush1.msra.mxu0 0.0
      %299 = vmatprep.subr.mxu0 0.0
      %300 = vmatpush1.msra.mxu0 0.0
      %301 = vmatprep.mubr.f32.mxu0 0.0
      %302 = vmatmul.mubr.f32.gmra.mrb[0].mxu0 %v232
      %v303 = vpop.f32.mrb[0].mxu0
      %v304 = vadd.f32 0.0, %v303
      %v305 = vpop.f32.mrb[0].mxu0
      %306 = vmatprep.mubr.f32.mxu0 0.0
      %307 = vmatmul.mubr.f32.gmra.mrb[0].mxu0 %v235
      %v308 = vpop.f32.mrb[0].mxu0
      %v309 = vadd.f32 0.0, %v308
      %v310 = vpop.f32.mrb[0].mxu0
      %311 = vdwg.mxu0
      %v312 = vld [vmem:[%s2] sm:$0xff]
      %v313 = vld [vmem:[#allocation3] sm:$0xff]
      %v314 = vld [vmem:[#allocation3 + $0x8] sm:$0xff]
      %316 = vset.pattern.permute.xlu0 0
      %317 = vperm.xlu0 %316, %v313
      %v318 = vpop.permute.xlu0 %317
      %321 = vset.pattern.permute.xlu0 0
      %322 = vperm.xlu0 %321, %v314
      %v323 = vpop.permute.xlu0 %322
      %vm325 = vcmask 64512
      %v327 = vsel %vm325, %v304, 0
      %v330 = vsel %vm325, %v309, 0
      %332 = vmatprep.subr.mxu0 0.0
      %333 = vmatpush1.msra.mxu0 %v312
      %334 = vmatprep.subr.mxu0 0.0
      %335 = vmatpush1.msra.mxu0 0.0
      %336 = vmatprep.subr.mxu0 0.0
      %337 = vmatpush1.msra.mxu0 0.0
      %338 = vmatprep.subr.mxu0 0.0
      %339 = vmatpush1.msra.mxu0 0.0
      %340 = vmatprep.subr.mxu0 0.0
      %341 = vmatpush1.msra.mxu0 0.0
      %342 = vmatprep.subr.mxu0 0.0
      %343 = vmatpush1.msra.mxu0 0.0
      %344 = vmatprep.subr.mxu0 0.0
      %345 = vmatpush1.msra.mxu0 0.0
      %346 = vmatprep.subr.mxu0 0.0
      %347 = vmatpush1.msra.mxu0 0.0
      %348 = vmatprep.subr.mxu0 0.0
      %349 = vmatpush1.msra.mxu0 0.0
      %350 = vmatprep.subr.mxu0 0.0
      %351 = vmatpush1.msra.mxu0 0.0
      %352 = vmatprep.subr.mxu0 0.0
      %353 = vmatpush1.msra.mxu0 0.0
      %354 = vmatprep.subr.mxu0 0.0
      %355 = vmatpush1.msra.mxu0 0.0
      %356 = vmatprep.subr.mxu0 0.0
      %357 = vmatpush1.msra.mxu0 0.0
      %358 = vmatprep.subr.mxu0 0.0
      %359 = vmatpush1.msra.mxu0 0.0
      %360 = vmatprep.subr.mxu0 0.0
      %361 = vmatpush1.msra.mxu0 0.0
      %362 = vmatprep.subr.mxu0 0.0
      %363 = vmatpush1.msra.mxu0 0.0
      %364 = vmatprep.subr.mxu0 0.0
      %365 = vmatpush1.msra.mxu0 0.0
      %366 = vmatprep.subr.mxu0 0.0
      %367 = vmatpush1.msra.mxu0 0.0
      %368 = vmatprep.subr.mxu0 0.0
      %369 = vmatpush1.msra.mxu0 0.0
      %370 = vmatprep.subr.mxu0 0.0
      %371 = vmatpush1.msra.mxu0 0.0
      %372 = vmatprep.subr.mxu0 0.0
      %373 = vmatpush1.msra.mxu0 0.0
      %374 = vmatprep.subr.mxu0 0.0
      %375 = vmatpush1.msra.mxu0 0.0
      %376 = vmatprep.subr.mxu0 0.0
      %377 = vmatpush1.msra.mxu0 0.0
      %378 = vmatprep.subr.mxu0 0.0
      %379 = vmatpush1.msra.mxu0 0.0
      %380 = vmatprep.subr.mxu0 0.0
      %381 = vmatpush1.msra.mxu0 0.0
      %382 = vmatprep.subr.mxu0 0.0
      %383 = vmatpush1.msra.mxu0 0.0
      %384 = vmatprep.subr.mxu0 0.0
      %385 = vmatpush1.msra.mxu0 0.0
      %386 = vmatprep.subr.mxu0 0.0
      %387 = vmatpush1.msra.mxu0 0.0
      %388 = vmatprep.subr.mxu0 0.0
      %389 = vmatpush1.msra.mxu0 0.0
      %390 = vmatprep.subr.mxu0 0.0
      %391 = vmatpush1.msra.mxu0 0.0
      %392 = vmatprep.subr.mxu0 0.0
      %393 = vmatpush1.msra.mxu0 0.0
      %394 = vmatprep.subr.mxu0 0.0
      %395 = vmatpush1.msra.mxu0 0.0
      %396 = vmatprep.mubr.f32.mxu0 0.0
      %397 = vmatmul.mubr.f32.gmra.mrb[0].mxu0 %v327
      %v398 = vpop.f32.mrb[0].mxu0
      %v399 = vadd.f32 %v318, %v398
      %v400 = vpop.f32.mrb[0].mxu0
      %401 = vmatprep.mubr.f32.mxu0 0.0
      %402 = vmatmul.mubr.f32.gmra.mrb[0].mxu0 %v330
      %v403 = vpop.f32.mrb[0].mxu0
      %v404 = vadd.f32 %v323, %v403
      %v405 = vpop.f32.mrb[0].mxu0
      %406 = vdwg.mxu0
      %407 = vst.msk [vmem:[%s201] sm:$0xff] %vm325, %v399
      %408 = vst.msk [vmem:[%s201 + $0x8] sm:$0xff] %vm325, %v404
      %411 = vrot.lane.b32.xlu0 %v399, 121
      %v412 = vpop.permute.xlu0 %411
      %413 = vrot.lane.b32.xlu0 %v404, 121
      %v414 = vpop.permute.xlu0 %413
      %vm417 = vcmask 7168
      %418 = vst.msk [vmem:[#allocation3] sm:$0xff] %vm417, %v412
      %419 = vst.msk [vmem:[#allocation3 + $0x8] sm:$0xff] %vm417, %v414
      %p420 = scmp.lt.s32.totalorder %s18, 1
      %s421 = scalar_select %p420, %s18, 1
      %p422 = scmp.lt.s32.totalorder %s19, 0
      %s423 = scalar_select %p422, %s19, 0
      %s424 = smul.addr %s421, 2
      %s425 = sadd.s32 %s423, %s424
      %s426 = smul.addr %s425, 8
      %s427 = scalar_lea.vmem %s3, %s426
      // Predicated region
      $region37: #{tpu_custom_call.1} parent=31 // pred_check
        %p428 = pneg %p116
      $region38: #{tpu_custom_call.1} parent=31 // pred_check_branch
        %430 = sbr.rel (%p428) target = $region40
      $region39: #{tpu_custom_call.1} parent=31 // pred_region
        _
      $region40: #{tpu_custom_call.1} parent=31 // pred_fallthru
        _
    $region32: #{tpu_custom_call.1} parent=5 // pred_fallthru
      _
    %p431 = scmp.le.s32.totalorder 2, %s9
    // Predicated region
    $region41: #{tpu_custom_call.1} parent=5 // pred_check
      %p432 = pneg %p431
    $region42: #{tpu_custom_call.1} parent=5 // pred_check_branch
      %434 = sbr.rel (%p432) target = $region44
    $region43: #{tpu_custom_call.1} parent=5 // pred_region
      %s435 = ssub.s32 %s9, 2
      // Predicated region
      $region45: #{tpu_custom_call.1} parent=43 // pred_check
        %p436 = pneg %p122
      $region46: #{tpu_custom_call.1} parent=43 // pred_check_branch
        %438 = sbr.rel (%p436) target = $region48
      $region47: #{tpu_custom_call.1} parent=43 // pred_region
        %p439 = scmp.lt.s32.totalorder %s20, 1
        %s440 = scalar_select %p439, %s20, 1
        %p441 = scmp.lt.s32.totalorder %s21, 0
        %s442 = scalar_select %p441, %s21, 0
        %s443 = smul.addr %s440, 2
        %s444 = sadd.s32 %s442, %s443
        %s445 = smul.addr %s444, 8
        %s446 = scalar_lea.vmem %s3, %s445
      $region48: #{tpu_custom_call.1} parent=43 // pred_fallthru
        _
    $region44: #{tpu_custom_call.1} parent=5 // pred_fallthru
      _
  $region6: #{tpu_custom_call.1} parent=0 // loop_footer
    %s13 = sadd.s32 1, %s9
  $region7: #{tpu_custom_call.1} parent=0 // loop_footer_branch
    %8 = sbr.rel target = $region3
  $region8: #{tpu_custom_call.1} parent=0 // loop_exit
    _

</llo_original>
